<compile_context>
chip_gen: v5e
topology: v5e:2x2
jax: 0.10.0
libtpu: 0.0.40
codegen_flags: <defaults>
</compile_context>

<pallas_src>
import math

import jax
import jax.numpy as jnp
from jax.experimental import pallas as pl
from jax.experimental.pallas import tpu as pltpu

_LN_001 = math.log(0.01)   # 0.01**d == exp(d * ln(0.01))
_LANES = 128
_SUBLANES = 8
# pad value for x (with y padded to 0): 0.01**3e4 = exp(-1.38e5) -> 0.0 exactly
_PAD_X = 3.0e4


def _loss_partial_sum_kernel(x_ref, y_ref, o_ref, acc_ref):
    """Accumulates sum(0.01**(x-y)) of this core's row-sweep into an (8,128) block."""
    # reset accumulator at the start of every reduction sweep
    @pl.when(pl.program_id(1) == 0)
    def _():
        acc_ref[...] = jnp.zeros_like(acc_ref)

    d = x_ref[...].astype(jnp.float32) - y_ref[...].astype(jnp.float32)
    vals = jnp.exp(d * _LN_001)                       # (tr, 128), EUP transcendental
    # Fold the tile into the vreg-shaped accumulator with pure VPU adds
    # (sum over the leading "vreg group" axis -> no cross-lane/XLU work here).
    acc_ref[...] += jnp.sum(vals.reshape(-1, _SUBLANES, _LANES), axis=0)

    # write this core's partial sums once, at the end of its sweep
    @pl.when(pl.program_id(1) == pl.num_programs(1) - 1)
    def _():
        o_ref[...] = acc_ref[...]


def creatm_loss(x, y, *, tile_rows: int = 1024, num_cores: int = 2):
    """Computes mean(0.01 ** (x - y)) with a Pallas TPU kernel.

    x, y: same-shape floating-point arrays (any shape / dtype).
    """
    assert x.shape == y.shape, "x and y must have the same shape"
    total = int(x.size)

    # --- tile / grid selection -------------------------------------------
    tile_rows = max(_SUBLANES, (tile_rows + _SUBLANES - 1) // _SUBLANES * _SUBLANES)
    rows_needed = pl.cdiv(total, _LANES)

    if rows_needed <= tile_rows:
        # tiny input: one block, one grid step (no pipelining overhead)
        tr = max(_SUBLANES, (rows_needed + _SUBLANES - 1) // _SUBLANES * _SUBLANES)
        nc = 1
        kt = 1
    else:
        tr = tile_rows
        # split the sweep across TensorCores only when there is enough work
        nc = num_cores if rows_needed >= num_cores * tile_rows else 1
        kt = pl.cdiv(rows_needed, nc * tr)

    padded_rows = nc * kt * tr
    padded_total = padded_rows * _LANES

    # --- flatten + pad (native dtype; cast happens in-kernel) -------------
    flat_x = jnp.reshape(x, (-1,))
    flat_y = jnp.reshape(y, (-1,))
    pad = padded_total - total
    if pad:
        # 0.01**(_PAD_X - 0) underflows to exactly 0 -> padding adds nothing.
        flat_x = jnp.pad(flat_x, (0, pad), constant_values=_PAD_X)
        flat_y = jnp.pad(flat_y, (0, pad), constant_values=0)
    x2 = jnp.reshape(flat_x, (padded_rows, _LANES))
    y2 = jnp.reshape(flat_y, (padded_rows, _LANES))

    in_map = lambda c, k, _kt=kt: (c * _kt + k, 0)

    partials = pl.pallas_call(
        _loss_partial_sum_kernel,
        out_shape=jax.ShapeDtypeStruct((nc * _SUBLANES, _LANES), jnp.float32),
        grid_spec=pltpu.PrefetchScalarGridSpec(
            num_scalar_prefetch=0,
            grid=(nc, kt),
            in_specs=[
                pl.BlockSpec((tr, _LANES), in_map),
                pl.BlockSpec((tr, _LANES), in_map),
            ],
            out_specs=pl.BlockSpec((_SUBLANES, _LANES), lambda c, k: (c, 0)),
            scratch_shapes=[pltpu.VMEM((_SUBLANES, _LANES), jnp.float32)],
        ),
        compiler_params=pltpu.CompilerParams(
            dimension_semantics=("parallel", "arbitrary"),
        ),
    )(x2, y2)

    # final (tiny) cross-lane reduction + mean in plain JAX
    return jnp.sum(partials, dtype=jnp.float32) / jnp.float32(total)


if __name__ == "__main__":
    key = jax.random.PRNGKey(0)
    kx, ky, kx2, ky2 = jax.random.split(key, 4)

    # Small NCHW shape consistent with the module's generic elementwise use.
    B, C, H, W = 2, 4, 16, 16
    x = jax.random.normal(kx, (B, C, H, W), dtype=jnp.float32)
    y = jax.random.normal(ky, (B, C, H, W), dtype=jnp.float32)

    loss = jax.block_until_ready(creatm_loss(x, y))
    ref = jnp.mean(jnp.power(0.01, x - y))
    assert jnp.allclose(loss, ref, rtol=1e-5, atol=1e-6), (loss, ref)

    # Ragged shape (total not a multiple of 128) exercises the padding path.
    xr = jax.random.normal(kx2, (2, 3, 7, 5), dtype=jnp.float32)
    yr = jax.random.normal(ky2, (2, 3, 7, 5), dtype=jnp.float32)
    loss_r = jax.block_until_ready(creatm_loss(xr, yr))
    ref_r = jnp.mean(jnp.power(0.01, xr - yr))
    assert jnp.allclose(loss_r, ref_r, rtol=1e-5, atol=1e-6), (loss_r, ref_r)

    print("KERNEL_OK")
</pallas_src>

<mosaic_0001>
module attributes {stable_mosaic.version = 11 : i64} {
  func.func @_loss_partial_sum_kernel(%arg0: i32, %arg1: i32, %arg2: memref<16x128xf32, #tpu.memory_space<vmem>>, %arg3: memref<16x128xf32, #tpu.memory_space<vmem>>, %arg4: memref<8x128xf32, #tpu.memory_space<vmem>>, %arg5: memref<8x128xf32, #tpu.memory_space<vmem>>) attributes {dimension_semantics = [#tpu.dimension_semantics<parallel>, #tpu.dimension_semantics<arbitrary>], iteration_bounds = array<i64: 1, 1>, scalar_prefetch = 0 : i64, scratch_operands = 1 : i64, tpu.core_type = #tpu.core_type<tc>, window_params = [{transform_indices = @transform_0, window_bounds = array<i64: 16, 128>}, {transform_indices = @transform_1, window_bounds = array<i64: 16, 128>}, {transform_indices = @transform_2, window_bounds = array<i64: 8, 128>}]} {
    %c0_i32 = arith.constant 0 : i32
    %0 = arith.cmpi eq, %arg1, %c0_i32 : i32
    %1 = arith.extui %0 : i1 to i32
    %c0_i32_0 = arith.constant 0 : i32
    %2 = arith.cmpi ne, %1, %c0_i32_0 : i32
    scf.if %2 {
      %cst_11 = arith.constant 0.000000e+00 : f32
      %17 = vector.broadcast %cst_11 : f32 to vector<8x128xf32>
      %c0_12 = arith.constant 0 : index
      %c0_13 = arith.constant 0 : index
      %18 = vector.load %arg5[%c0_12, %c0_13] : memref<8x128xf32, #tpu.memory_space<vmem>>, vector<8x128xf32>
      tpu.vector_store %arg5[%c0_12, %c0_13], %17 {strides = array<i32>} : memref<8x128xf32, #tpu.memory_space<vmem>>, vector<8x128xf32>,
    } else {
    }
    %c0 = arith.constant 0 : index
    %c0_1 = arith.constant 0 : index
    %3 = vector.load %arg2[%c0, %c0_1] : memref<16x128xf32, #tpu.memory_space<vmem>>, vector<16x128xf32>
    %c0_2 = arith.constant 0 : index
    %c0_3 = arith.constant 0 : index
    %4 = vector.load %arg3[%c0_2, %c0_3] : memref<16x128xf32, #tpu.memory_space<vmem>>, vector<16x128xf32>
    %5 = arith.subf %3, %4 : vector<16x128xf32>
    %cst = arith.constant -4.60517025 : f32
    %6 = vector.broadcast %cst : f32 to vector<16x128xf32>
    %7 = arith.mulf %5, %6 : vector<16x128xf32>
    %8 = math.exp %7 : vector<16x128xf32>
    %c0_4 = arith.constant 0 : index
    %c0_5 = arith.constant 0 : index
    %9 = vector.load %arg5[%c0_4, %c0_5] : memref<8x128xf32, #tpu.memory_space<vmem>>, vector<8x128xf32>
    %10 = vector.shape_cast %8 : vector<16x128xf32> to vector<2x8x128xf32>
    %cst_6 = arith.constant dense<0.000000e+00> : vector<8x128xf32>
    %11 = vector.multi_reduction <add>, %10, %cst_6 [0] : vector<2x8x128xf32> to vector<8x128xf32>
    %12 = arith.addf %9, %11 : vector<8x128xf32>
    %c0_7 = arith.constant 0 : index
    %c0_8 = arith.constant 0 : index
    %13 = vector.load %arg5[%c0_7, %c0_8] : memref<8x128xf32, #tpu.memory_space<vmem>>, vector<8x128xf32>
    tpu.vector_store %arg5[%c0_7, %c0_8], %12 {strides = array<i32>} : memref<8x128xf32, #tpu.memory_space<vmem>>, vector<8x128xf32>,
    %c0_i32_9 = arith.constant 0 : i32
    %14 = arith.cmpi eq, %arg1, %c0_i32_9 : i32
    %15 = arith.extui %14 : i1 to i32
    %c0_i32_10 = arith.constant 0 : i32
    %16 = arith.cmpi ne, %15, %c0_i32_10 : i32
    scf.if %16 {
      %c0_11 = arith.constant 0 : index
      %c0_12 = arith.constant 0 : index
      %17 = vector.load %arg5[%c0_11, %c0_12] : memref<8x128xf32, #tpu.memory_space<vmem>>, vector<8x128xf32>
      %c0_13 = arith.constant 0 : index
      %c0_14 = arith.constant 0 : index
      %18 = vector.load %arg4[%c0_13, %c0_14] : memref<8x128xf32, #tpu.memory_space<vmem>>, vector<8x128xf32>
      tpu.vector_store %arg4[%c0_13, %c0_14], %17 {strides = array<i32>} : memref<8x128xf32, #tpu.memory_space<vmem>>, vector<8x128xf32>,
    } else {
    }
    return
  }
  func.func @transform_0(%arg0: i32, %arg1: i32) -> (i32, i32) {
    %c1_i32 = arith.constant 1 : i32
    %0 = arith.muli %arg0, %c1_i32 : i32
    %1 = arith.addi %0, %arg1 : i32
    %c0_i32 = arith.constant 0 : i32
    %c0_i32_0 = arith.constant 0 : i32
    return %1, %c0_i32 : i32, i32
  }
  func.func @transform_1(%arg0: i32, %arg1: i32) -> (i32, i32) {
    %c1_i32 = arith.constant 1 : i32
    %0 = arith.muli %arg0, %c1_i32 : i32
    %1 = arith.addi %0, %arg1 : i32
    %c0_i32 = arith.constant 0 : i32
    %c0_i32_0 = arith.constant 0 : i32
    return %1, %c0_i32 : i32, i32
  }
  func.func @transform_2(%arg0: i32, %arg1: i32) -> (i32, i32) {
    %c0_i32 = arith.constant 0 : i32
    %c0_i32_0 = arith.constant 0 : i32
    return %arg0, %c0_i32 : i32, i32
  }
}

</mosaic_0001>

<llo_original>
// kernel: tpu_custom_call.1
$region0: #{tpu_custom_call.1}
  #allocation0 [shape = 'u32[]', space=smem, size = 0x4, offset = 0x4, fixed_abs, tag = 'smem constant byte address 0x4 - core index']
  #allocation1 [shape = 'u32[72,128]{1,0:T(1,128)}', space=vmem, size = 0x9000, scoped, tag = 'internal scratch']
  #allocation2 [shape = 'f32[8,128]{1,0:T(8,128)}', space=vmem, size = 0x1000, scoped, tag = 'scratch operand']
  %s0 = inlined_call_operand.hbm [shape: f32[16,128], index: 0, kind: input, shape index: {}]
  %s1 = inlined_call_operand.hbm [shape: f32[16,128], index: 1, kind: input, shape index: {}]
  %s2 = inlined_call_operand.hbm [shape: f32[8,128], index: 2, kind: output, shape index: {}]
  %s3 = sld [smem:[#allocation0]]
  $region34: #{tpu_custom_call.1} parent=0
    _
  %s5 = ssub.s32 1, %s3
  %s6 = scalar_select 0, %s5, %s3
  $region1: #{tpu_custom_call.1} parent=0
    #allocation3 [shape = 'u8[8192]{0}', space=vmem, size = 0x2000, scoped, tag = 'input window, operand 0, single buffered']
    #allocation4 [shape = 's32[1]{0}', space=sflag, size = 0x4, scoped, tag = 'scoped memory for tpu_custom_call.1']
    #allocation5 [shape = 's32[1]{0}', space=sflag, size = 0x4, scoped, tag = 'scoped memory for tpu_custom_call.1']
    #allocation6 [shape = 'u8[8192]{0}', space=vmem, size = 0x2000, scoped, tag = 'input window, operand 1, single buffered']
    #allocation7 [shape = 's32[1]{0}', space=sflag, size = 0x4, scoped, tag = 'scoped memory for tpu_custom_call.1']
    #allocation8 [shape = 'u8[4096]{0}', space=vmem, size = 0x1000, scoped, tag = 'output window, operand 0, single buffered']
    %7 = vsyncpa [#allocation4], 0
    %8 = vsyncpa [#allocation7], 0
    %9 = vsyncpa [#allocation5], 0
    // Predicated region
    $region2: #{tpu_custom_call.1} parent=1 // pred_check
      _
    $region3: #{tpu_custom_call.1} parent=1 // pred_check_branch
      %11 = sbr.rel (0) target = $region5
    $region4: #{tpu_custom_call.1} parent=1 // pred_region
      %s12 = sadd.s32 0, 0
      %s13 = smul.u32 2, %s12
      %15 = vsyncadd [#allocation4], 0
      %s16 = smul.addr %s13, 8
      %s17 = scalar_lea.hbm %s0, %s16
      %s18 = sshll.u32 %s17, 4
      %s19 = int_to_ptr.hbm [resolvable:$true] %s18
      %s20 = sshll.u32 [#allocation3], 4
      %s21 = int_to_ptr.vmem [resolvable:$true] %s20
      %26 = dma.hbm_to_vmem [thread:$0]  %s19, 256, %s21, [#allocation4], 128, 128, 8
    $region5: #{tpu_custom_call.1} parent=1 // pred_fallthru
      _
    // Predicated region
    $region6: #{tpu_custom_call.1} parent=1 // pred_check
      _
    $region7: #{tpu_custom_call.1} parent=1 // pred_check_branch
      %28 = sbr.rel (0) target = $region9
    $region8: #{tpu_custom_call.1} parent=1 // pred_region
      %s29 = sadd.s32 0, 0
      %s30 = smul.u32 2, %s29
      %32 = vsyncadd [#allocation7], 0
      %s33 = smul.addr %s30, 8
      %s34 = scalar_lea.hbm %s1, %s33
      %s35 = sshll.u32 %s34, 4
      %s36 = int_to_ptr.hbm [resolvable:$true] %s35
      %s37 = sshll.u32 [#allocation6], 4
      %s38 = int_to_ptr.vmem [resolvable:$true] %s37
      %43 = dma.hbm_to_vmem [thread:$0]  %s36, 256, %s38, [#allocation7], 128, 128, 8
    $region9: #{tpu_custom_call.1} parent=1 // pred_fallthru
      _
    // Predicated region
    $region10: #{tpu_custom_call.1} parent=1 // pred_check
      _
    $region11: #{tpu_custom_call.1} parent=1 // pred_check_branch
      %45 = sbr.rel (0) target = $region13
    $region12: #{tpu_custom_call.1} parent=1 // pred_region
      %47 = dma.done [#allocation4], 256
    $region13: #{tpu_custom_call.1} parent=1 // pred_fallthru
      _
    // Predicated region
    $region14: #{tpu_custom_call.1} parent=1 // pred_check
      _
    $region15: #{tpu_custom_call.1} parent=1 // pred_check_branch
      %49 = sbr.rel (0) target = $region17
    $region16: #{tpu_custom_call.1} parent=1 // pred_region
      %51 = dma.done [#allocation7], 256
    $region17: #{tpu_custom_call.1} parent=1 // pred_fallthru
      _
    %s52 = sadd.s32 0, 0
    %s53 = smul.u32 2, %s52
    %s54 = sadd.s32 0, 0
    %s55 = smul.u32 2, %s54
    %p56 = scmp.eq.s32.totalorder 0, 0
    // Predicated region
    $region18: #{tpu_custom_call.1} parent=1 // pred_check
      %p57 = pneg %p56
    $region19: #{tpu_custom_call.1} parent=1 // pred_check_branch
      %59 = sbr.rel (%p57) target = $region21
    $region20: #{tpu_custom_call.1} parent=1 // pred_region
      %60 = vst [vmem:[#allocation2] sm:$0xff] 0.0
    $region21: #{tpu_custom_call.1} parent=1 // pred_fallthru
      _
    %v61 = vld [vmem:[#allocation3] sm:$0xff]
    %v62 = vld [vmem:[#allocation3 + $0x8] sm:$0xff]
    %v63 = vld [vmem:[#allocation6] sm:$0xff]
    %v64 = vld [vmem:[#allocation6 + $0x8] sm:$0xff]
    %v65 = vsub.f32 %v61, %v63
    %v66 = vsub.f32 %v62, %v64
    %v67 = vmul.f32 %v65, -4.6051702
    %v68 = vmul.f32 %v66, -4.6051702
    %v69 = vmul.f32 %v67, 1.442695
    %v70 = vpow.pop %v69
    %v71 = vmul.f32 %v68, 1.442695
    %v72 = vpow.pop %v71
    %v73 = vld [vmem:[#allocation2] sm:$0xff]
    %v74 = vadd.f32 %v70, %v72
    %v75 = vadd.f32 %v73, %v74
    %76 = vst [vmem:[#allocation2] sm:$0xff] %v75
    // Predicated region
    $region22: #{tpu_custom_call.1} parent=1 // pred_check
      %p77 = pneg %p56
    $region23: #{tpu_custom_call.1} parent=1 // pred_check_branch
      %79 = sbr.rel (%p77) target = $region25
    $region24: #{tpu_custom_call.1} parent=1 // pred_region
      %v80 = vld [vmem:[#allocation2] sm:$0xff]
      %81 = vst [vmem:[#allocation8] sm:$0xff] %v80
    $region25: #{tpu_custom_call.1} parent=1 // pred_fallthru
      _
    // Predicated region
    $region26: #{tpu_custom_call.1} parent=1 // pred_check
      _
    $region27: #{tpu_custom_call.1} parent=1 // pred_check_branch
      %83 = sbr.rel (0) target = $region29
    $region28: #{tpu_custom_call.1} parent=1 // pred_region
      %85 = vsyncadd [#allocation5], 0
      %s87 = sshll.u32 [#allocation8], 4
      %s88 = int_to_ptr.vmem [resolvable:$true] %s87
      %s89 = sshll.u32 %s2, 4
      %s90 = int_to_ptr.hbm [resolvable:$true] %s89
      %92 = dma.vmem_to_hbm [thread:$0]  %s88, 128, %s90, [#allocation5]
    $region29: #{tpu_custom_call.1} parent=1 // pred_fallthru
      _
    // Predicated region
    $region30: #{tpu_custom_call.1} parent=1 // pred_check
      _
    $region31: #{tpu_custom_call.1} parent=1 // pred_check_branch
      %94 = sbr.rel (0) target = $region33
    $region32: #{tpu_custom_call.1} parent=1 // pred_region
      %96 = dma.done [#allocation5], 128
    $region33: #{tpu_custom_call.1} parent=1 // pred_fallthru
      _
    %97 = vsyncpa [#allocation4], 1
    %98 = vsyncpa [#allocation7], 1
    %99 = vsyncpa [#allocation5], 1

</llo_original>
